<compile_context>
chip_gen: v7x
topology: tpu7x:2x2x1
jax: 0.10.0
libtpu: 0.0.40
codegen_flags: <defaults>
</compile_context>

<pallas_src>
import numpy as np
import jax
import jax.numpy as jnp
from jax.experimental import pallas as pl
from jax.experimental.pallas import tpu as pltpu


def trust_kernel(params_ref, flags_ref, perf_ref, out_ref):
    # params (SMEM, f32[8]):
    #  [trust0, trust0 + T*wb, wtp, sigma0^2, sigma0^2 + T*sigma_t^2, do_update, 0, 0]
    trust0      = params_ref[0]
    trust_base  = params_ref[1]          # trust0 + T*wb
    wtp         = params_ref[2]
    sigma2_base = params_ref[3]          # sigma0^2
    sigma2_act  = params_ref[4]          # sigma0^2 + T*sigma_t^2
    do_update   = params_ref[5] > 0.5    # 0.0 when consttrust=True

    # sample is "active" iff its first-timestep obs row had any nonzero element
    active = jnp.logical_and(flags_ref[...] > 0.0, do_update)   # (1, tile_n)

    # y = -1 (fail) when perf == 1 else +1; sum over the sequence (sublane axis).
    # perf keeps the caller's dtype (f32 / bf16 / int8); compare natively.
    perf = perf_ref[...]                                        # (T, tile_n)
    y = jnp.where(perf == 1, -1.0, 1.0).astype(jnp.float32)     # (T, tile_n)
    sum_y = jnp.sum(y, axis=0, keepdims=True)                   # (1, tile_n)

    # Closed form of the sequential trustUpdate loop (obsseqlen steps)
    trust  = jnp.where(active, trust_base + wtp * sum_y, trust0)
    sigma2 = jnp.where(active, sigma2_act, sigma2_base)

    z = trust * jax.lax.rsqrt(sigma2)
    out_ref[...] = jnp.clip(jax.nn.sigmoid(z), 0.01, 0.99)      # (1, tile_n) lane-dense


def baseline_trust_forward(params, inptasksobs, inptasksperf,
                           inptaskspred=None, num_obs_tasks=None,
                           consttrust=False):
    # inptaskspred / num_obs_tasks are unused by the PyTorch forward; kept for
    # signature fidelity.  sigma_n is an unused parameter.
    T, N, D = inptasksobs.shape

    # Per-sample activity flag, computed in XLA (fused any-reduce over D) so the
    # kernel never reads the obs tensor at all.
    flags = jnp.any(inptasksobs[0] != 0, axis=-1).astype(jnp.float32)[None, :]   # (1, N)

    # Squeeze the trailing singleton only; no dtype cast (kernel handles it).
    perf = inptasksperf.reshape(T, N)                                            # (T, N)
    perf_bytes = int(jnp.dtype(perf.dtype).itemsize)

    # ---- tile sizing -------------------------------------------------------
    n_128 = ((N + 127) // 128) * 128
    # double-buffered VMEM bytes per lane: flags(4) + perf(T*perf_bytes) + out(4)
    per_lane = 2 * (4 + T * perf_bytes + 4)
    budget = 8 << 20                                   # fits v5e's 16 MiB scoped default
    tile_cap = max(128, ((budget // per_lane) // 128) * 128)
    # keep >= 4 grid steps when N is large so v7x megacore has parallel work
    quarter = (max(512, ((n_128 // 4 + 127) // 128) * 128)
               if n_128 >= 2048 else n_128)
    tile_n = min(tile_cap, n_128, quarter)
    grid = (pl.cdiv(N, tile_n),)                       # partial final tile, no padding

    trust0 = float(params["trust0"]); sigma0 = float(params["sigma0"])
    wb = float(params["wb"]); wtp = float(params["wtp"]); sigma_t = float(params["sigma_t"])
    p = jnp.array(
        [trust0,
         trust0 + T * wb,
         wtp,
         sigma0 * sigma0,
         sigma0 * sigma0 + T * sigma_t * sigma_t,
         0.0 if consttrust else 1.0,
         0.0, 0.0],
        dtype=jnp.float32)

    cost = pl.CostEstimate(
        flops=(2 * T + 8) * N,                         # compare/select/sum + affine + clip
        transcendentals=2 * N,                         # rsqrt + exp (sigmoid)
        bytes_accessed=(4 + T * perf_bytes + 4) * N + 8 * 4)

    out = pl.pallas_call(
        trust_kernel,
        out_shape=jax.ShapeDtypeStruct((1, N), jnp.float32),
        grid=grid,
        in_specs=[
            pl.BlockSpec(memory_space=pltpu.MemorySpace.SMEM),      # scalar params
            pl.BlockSpec((1, tile_n), lambda i: (0, i)),            # flags (1, N)
            pl.BlockSpec((T, tile_n), lambda i: (0, i)),            # perf  (T, N)
        ],
        out_specs=pl.BlockSpec((1, tile_n), lambda i: (0, i)),      # (1, N) lane-dense
        compiler_params=pltpu.CompilerParams(
            dimension_semantics=("parallel",)),
        cost_estimate=cost,
    )(p, flags, perf)

    return out.reshape(N, 1)


if __name__ == "__main__":
    # Small shapes consistent with the module: obsseqlen=8, N=16, inpsize=16
    T, N, D = 8, 16, 16

    # Deterministic parameters (matching __init__ shapes / ranges)
    params = {
        "trust0":  0.37,   # rand(1,1)
        "sigma0":  1.42,   # |rand + 1|
        "wb":      0.11,   # rand(1,1)
        "wtp":     0.23,   # rand(1,1)
        "sigma_t": 1.05,   # |rand + 1|
        "sigma_n": 1.30,   # unused in forward
    }

    key = jax.random.PRNGKey(0)
    k1, k2 = jax.random.split(key)
    inptasksobs = jax.random.uniform(k1, (T, N, D), dtype=jnp.float32)
    # zero-out the first-timestep obs of every 5th sample to hit the skip branch
    zero_mask = (jnp.arange(N) % 5 == 0)
    inptasksobs = inptasksobs.at[0].set(
        jnp.where(zero_mask[:, None], 0.0, inptasksobs[0]))
    inptasksperf = (jax.random.uniform(k2, (T, N, 1)) > 0.5).astype(jnp.float32)
    inptaskspred = jnp.zeros((1, N, D), dtype=jnp.float32)   # unused by forward

    out = baseline_trust_forward(params, inptasksobs, inptasksperf,
                                 inptaskspred, num_obs_tasks=T)
    out = jax.block_until_ready(out)

    # Pure-numpy reference reproducing the PyTorch loop exactly
    obs_np = np.asarray(inptasksobs)
    perf_np = np.asarray(inptasksperf)
    ref = np.zeros((N, 1), np.float32)
    for i in range(N):
        trust = params["trust0"]
        sigma2 = params["sigma0"] ** 2
        if not np.all(obs_np[0, i, :] == 0):
            for t in range(T):
                y = -1.0 if perf_np[t, i, 0] == 1 else 1.0
                trust = trust + params["wb"] + params["wtp"] * y
                sigma2 = sigma2 + params["sigma_t"] ** 2
        z = trust / np.sqrt(sigma2)
        ref[i, 0] = 1.0 / (1.0 + np.exp(-z))
    ref = np.clip(ref, 0.01, 0.99)

    np.testing.assert_allclose(np.asarray(out), ref, rtol=1e-5, atol=1e-5)
    assert out.shape == (N, 1) and out.dtype == jnp.float32

    # Also exercise the consttrust branch
    out_const = jax.block_until_ready(
        baseline_trust_forward(params, inptasksobs, inptasksperf,
                               inptaskspred, num_obs_tasks=T, consttrust=True))
    ref_const = np.clip(
        1.0 / (1.0 + np.exp(-params["trust0"] / params["sigma0"])), 0.01, 0.99)
    np.testing.assert_allclose(np.asarray(out_const),
                               np.full((N, 1), ref_const, np.float32),
                               rtol=1e-5, atol=1e-5)

    print("KERNEL_OK")
</pallas_src>

<mosaic_0001>
module attributes {stable_mosaic.version = 11 : i64} {
  func.func @trust_kernel(%arg0: i32, %arg1: memref<8xf32, #tpu.memory_space<smem>>, %arg2: memref<1x128xf32, #tpu.memory_space<vmem>>, %arg3: memref<8x128xf32, #tpu.memory_space<vmem>>, %arg4: memref<1x128xf32, #tpu.memory_space<vmem>>) attributes {dimension_semantics = [#tpu.dimension_semantics<parallel>], iteration_bounds = array<i64: 1>, scalar_prefetch = 0 : i64, scratch_operands = 0 : i64, tpu.core_type = #tpu.core_type<tc>, window_params = [{transform_indices = @transform_0, window_bounds = array<i64: 8>}, {transform_indices = @transform_1, window_bounds = array<i64: 1, 128>}, {transform_indices = @transform_2, window_bounds = array<i64: 8, 128>}, {transform_indices = @transform_3, window_bounds = array<i64: 1, 128>}]} {
    %c0 = arith.constant 0 : index
    %0 = memref.load %arg1[%c0] : memref<8xf32, #tpu.memory_space<smem>>
    %c1 = arith.constant 1 : index
    %1 = memref.load %arg1[%c1] : memref<8xf32, #tpu.memory_space<smem>>
    %c2 = arith.constant 2 : index
    %2 = memref.load %arg1[%c2] : memref<8xf32, #tpu.memory_space<smem>>
    %c3 = arith.constant 3 : index
    %3 = memref.load %arg1[%c3] : memref<8xf32, #tpu.memory_space<smem>>
    %c4 = arith.constant 4 : index
    %4 = memref.load %arg1[%c4] : memref<8xf32, #tpu.memory_space<smem>>
    %c5 = arith.constant 5 : index
    %5 = memref.load %arg1[%c5] : memref<8xf32, #tpu.memory_space<smem>>
    %cst = arith.constant 5.000000e-01 : f32
    %6 = arith.cmpf ogt, %5, %cst : f32
    %c0_0 = arith.constant 0 : index
    %c0_1 = arith.constant 0 : index
    %7 = vector.load %arg2[%c0_0, %c0_1] : memref<1x128xf32, #tpu.memory_space<vmem>>, vector<1x128xf32>
    %cst_2 = arith.constant 0.000000e+00 : f32
    %8 = vector.broadcast %cst_2 : f32 to vector<1x128xf32>
    %9 = arith.cmpf ogt, %7, %8 : vector<1x128xf32>
    %10 = vector.broadcast %6 : i1 to vector<1x128xi1>
    %11 = arith.andi %9, %10 : vector<1x128xi1>
    %c0_3 = arith.constant 0 : index
    %c0_4 = arith.constant 0 : index
    %12 = vector.load %arg3[%c0_3, %c0_4] : memref<8x128xf32, #tpu.memory_space<vmem>>, vector<8x128xf32>
    %cst_5 = arith.constant 1.000000e+00 : f32
    %13 = vector.broadcast %cst_5 : f32 to vector<8x128xf32>
    %14 = arith.cmpf oeq, %12, %13 : vector<8x128xf32>
    %cst_6 = arith.constant -1.000000e+00 : f32
    %cst_7 = arith.constant 1.000000e+00 : f32
    %15 = vector.broadcast %cst_6 : f32 to vector<8x128xf32>
    %16 = vector.broadcast %cst_7 : f32 to vector<8x128xf32>
    %17 = arith.select %14, %15, %16 : vector<8x128xi1>, vector<8x128xf32>
    %cst_8 = arith.constant dense<0.000000e+00> : vector<128xf32>
    %18 = vector.multi_reduction <add>, %17, %cst_8 [0] : vector<8x128xf32> to vector<128xf32>
    %19 = vector.shape_cast %18 : vector<128xf32> to vector<1x128xf32>
    %20 = vector.broadcast %2 : f32 to vector<1x128xf32>
    %21 = arith.mulf %20, %19 : vector<1x128xf32>
    %22 = vector.broadcast %1 : f32 to vector<1x128xf32>
    %23 = arith.addf %22, %21 : vector<1x128xf32>
    %24 = vector.broadcast %0 : f32 to vector<1x128xf32>
    %25 = arith.select %11, %23, %24 : vector<1x128xi1>, vector<1x128xf32>
    %26 = vector.broadcast %4 : f32 to vector<1x128xf32>
    %27 = vector.broadcast %3 : f32 to vector<1x128xf32>
    %28 = arith.select %11, %26, %27 : vector<1x128xi1>, vector<1x128xf32>
    %29 = math.rsqrt %28 : vector<1x128xf32>
    %30 = arith.mulf %25, %29 : vector<1x128xf32>
    %31 = arith.negf %30 : vector<1x128xf32>
    %32 = math.exp %31 : vector<1x128xf32>
    %cst_9 = arith.constant 1.000000e+00 : f32
    %33 = vector.broadcast %cst_9 : f32 to vector<1x128xf32>
    %34 = arith.addf %33, %32 : vector<1x128xf32>
    %35 = arith.divf %33, %34 : vector<1x128xf32>
    %cst_10 = arith.constant 0.00999999977 : f32
    %cst_11 = arith.constant 9.900000e-01 : f32
    %36 = vector.broadcast %cst_10 : f32 to vector<1x128xf32>
    %37 = arith.maximumf %36, %35 : vector<1x128xf32>
    %38 = vector.broadcast %cst_11 : f32 to vector<1x128xf32>
    %39 = arith.minimumf %38, %37 : vector<1x128xf32>
    %c0_12 = arith.constant 0 : index
    %c0_13 = arith.constant 0 : index
    %40 = vector.load %arg4[%c0_12, %c0_13] : memref<1x128xf32, #tpu.memory_space<vmem>>, vector<1x128xf32>
    tpu.vector_store %arg4[%c0_12, %c0_13], %39 {strides = array<i32>} : memref<1x128xf32, #tpu.memory_space<vmem>>, vector<1x128xf32>,
    return
  }
  func.func @transform_0(%arg0: i32) -> i32 {
    %c0_i32 = arith.constant 0 : i32
    %c0_i32_0 = arith.constant 0 : i32
    return %c0_i32 : i32
  }
  func.func @transform_1(%arg0: i32) -> (i32, i32) {
    %c0_i32 = arith.constant 0 : i32
    %c0_i32_0 = arith.constant 0 : i32
    return %c0_i32, %arg0 : i32, i32
  }
  func.func @transform_2(%arg0: i32) -> (i32, i32) {
    %c0_i32 = arith.constant 0 : i32
    %c0_i32_0 = arith.constant 0 : i32
    return %c0_i32, %arg0 : i32, i32
  }
  func.func @transform_3(%arg0: i32) -> (i32, i32) {
    %c0_i32 = arith.constant 0 : i32
    %c0_i32_0 = arith.constant 0 : i32
    return %c0_i32, %arg0 : i32, i32
  }
}

</mosaic_0001>

<llo_original>
// kernel: tpu_custom_call.1
$region0: #{tpu_custom_call.1}
  #allocation0 [shape = 'u32[]', space=smem, size = 0x4, offset = 0x4, fixed_abs, tag = 'smem constant byte address 0x4 - core index']
  #allocation1 [shape = 'u32[144,128]{1,0:T(1,128)}', space=vmem, size = 0x12000, scoped, tag = 'internal scratch']
  %s0 = inlined_call_operand.hbm [shape: f32[8], index: 0, kind: input, shape index: {}]
  %s1 = inlined_call_operand.vmem [shape: f32[1,16], index: 1, kind: input, shape index: {}]
  %s2 = inlined_call_operand.hbm [shape: f32[8,16], index: 2, kind: input, shape index: {}]
  %s3 = inlined_call_operand.hbm [shape: f32[1,16], index: 3, kind: output, shape index: {}]
  %s4 = sld [smem:[#allocation0]]
  $region30: #{tpu_custom_call.1} parent=0
    _
  %s6 = ssub.s32 1, %s4
  %s7 = scalar_select 0, %s6, %s4
  $region1: #{tpu_custom_call.1} parent=0
    #allocation2 [shape = 'u8[512]{0}', space=smem, size = 0x200, scoped, tag = 'input window, operand 0, single buffered']
    #allocation3 [shape = 's32[1]{0}', space=sflag, size = 0x4, scoped, tag = 'scoped memory for tpu_custom_call.1']
    #allocation4 [shape = 's32[1]{0}', space=sflag, size = 0x4, scoped, tag = 'scoped memory for tpu_custom_call.1']
    #allocation5 [shape = 's32[1]{0}', space=sflag, size = 0x4, scoped, tag = 'scoped memory for tpu_custom_call.1']
    #allocation6 [shape = 'u8[4096]{0}', space=vmem, size = 0x1000, scoped, tag = 'input window, operand 2, single buffered']
    #allocation7 [shape = 'u8[512]{0}', space=vmem, size = 0x400, scoped, tag = 'output window, operand 0, single buffered']
    %8 = vsyncpa [#allocation5], 0
    %9 = vsyncpa [#allocation3], 0
    %10 = vsyncpa [#allocation4], 0
    // Predicated region
    $region2: #{tpu_custom_call.1} parent=1 // pred_check
      _
    $region3: #{tpu_custom_call.1} parent=1 // pred_check_branch
      %12 = sbr.rel (0) target = $region5
    $region4: #{tpu_custom_call.1} parent=1 // pred_region
      %s14 = ssub.s32 16, 16
      %15 = vsyncadd [#allocation5], %s14
      %18 = dma.hbm_to_smem %s0, 16, [#allocation2], [#allocation5]
    $region5: #{tpu_custom_call.1} parent=1 // pred_fallthru
      _
    // Predicated region
    $region6: #{tpu_custom_call.1} parent=1 // pred_check
      _
    $region7: #{tpu_custom_call.1} parent=1 // pred_check_branch
      %20 = sbr.rel (0) target = $region9
    $region8: #{tpu_custom_call.1} parent=1 // pred_region
      _
    $region9: #{tpu_custom_call.1} parent=1 // pred_fallthru
      _
    // Predicated region
    $region10: #{tpu_custom_call.1} parent=1 // pred_check
      _
    $region11: #{tpu_custom_call.1} parent=1 // pred_check_branch
      %22 = sbr.rel (0) target = $region13
    $region12: #{tpu_custom_call.1} parent=1 // pred_region
      %s24 = ssub.s32 128, 128
      %25 = vsyncadd [#allocation3], %s24
      %s27 = sshll.u32 [#allocation6], 4
      %s28 = int_to_ptr.vmem [resolvable:$true] %s27
      %30 = dma.hbm_to_vmem [thread:$0]  %s2, 128, %s28, [#allocation3]
    $region13: #{tpu_custom_call.1} parent=1 // pred_fallthru
      _
    // Predicated region
    $region14: #{tpu_custom_call.1} parent=1 // pred_check
      _
    $region15: #{tpu_custom_call.1} parent=1 // pred_check_branch
      %32 = sbr.rel (0) target = $region17
    $region16: #{tpu_custom_call.1} parent=1 // pred_region
      %33 = dma.done [#allocation5], 16
    $region17: #{tpu_custom_call.1} parent=1 // pred_fallthru
      _
    // Predicated region
    $region18: #{tpu_custom_call.1} parent=1 // pred_check
      _
    $region19: #{tpu_custom_call.1} parent=1 // pred_check_branch
      %35 = sbr.rel (0) target = $region21
    $region20: #{tpu_custom_call.1} parent=1 // pred_region
      %36 = dma.done [#allocation3], 128
    $region21: #{tpu_custom_call.1} parent=1 // pred_fallthru
      _
    %37 = sfence
    %s38 = sld [smem:[#allocation2]]
    %s39 = sld [smem:[#allocation2 + $0x1]]
    %s40 = sld [smem:[#allocation2 + $0x2]]
    %s41 = sld [smem:[#allocation2 + $0x3]]
    %s42 = sld [smem:[#allocation2 + $0x4]]
    %s43 = sld [smem:[#allocation2 + $0x5]]
    %p44 = scmp.gt.f32.partialorder %s43, 0.5
    %v45 = vld [vmem:[%s1] sm:$0x1]
    %vm46 = vcmp.gt.f32.partialorder %v45, 0.0
    %s47 = scalar_select %p44, 1, 0
    %v48 = vstv %s47
    %vm49 = vcmp.eq.s32.totalorder %v48, 1
    %vm50 = vmand %vm46, %vm49
    %v51 = vld [vmem:[#allocation6] sm:$0xff]
    %vm52 = vcmp.eq.f32.partialorder %v51, 1.0
    %v53 = vsel %vm52, -1.0, 1.0
    %v54 = vrot.slane %v53, 4
    %v55 = vadd.f32 %v53, %v54
    %v56 = vrot.slane %v55, 2
    %v57 = vadd.f32 %v55, %v56
    %v58 = vrot.slane %v57, 1
    %v59 = vadd.f32 %v57, %v58
    %v60 = vstv %s40
    %v61 = vmul.f32 %v60, %v59
    %v62 = vstv %s39
    %v63 = vadd.f32 %v62, %v61
    %v64 = vstv %s38
    %v65 = vsel %vm50, %v63, %v64
    %v66 = vstv %s42
    %v67 = vstv %s41
    %v68 = vsel %vm50, %v66, %v67
    %v69 = vrsqrt.pop %v68
    %v70 = vmul.f32 %v65, %v69
    %v71 = vxor.u32 %v70, 2147483648
    %v72 = vmul.f32 %v71, 1.442695
    %v73 = vpow.pop %v72
    %v74 = vadd.f32 %v73, 1.0
    %v75 = vrcp.pop %v74
    %v76 = vmul.f32 1.0, %v75
    %v77 = vmax.f32 %v76, 0.01
    %v78 = vmin.f32 %v77, 0.99
    %79 = vst [vmem:[#allocation7] sm:$0x1] %v78
    // Predicated region
    $region22: #{tpu_custom_call.1} parent=1 // pred_check
      _
    $region23: #{tpu_custom_call.1} parent=1 // pred_check_branch
      %81 = sbr.rel (0) target = $region25
    $region24: #{tpu_custom_call.1} parent=1 // pred_region
      %s83 = ssub.s32 16, 16
      %84 = vsyncadd [#allocation4], %s83
      %s86 = sshll.u32 [#allocation7], 4
      %s87 = int_to_ptr.vmem [resolvable:$true] %s86
      %89 = dma.vmem_to_hbm [thread:$0]  %s87, 16, %s3, [#allocation4]
    $region25: #{tpu_custom_call.1} parent=1 // pred_fallthru
      _
    // Predicated region
    $region26: #{tpu_custom_call.1} parent=1 // pred_check
      _
    $region27: #{tpu_custom_call.1} parent=1 // pred_check_branch
      %91 = sbr.rel (0) target = $region29
    $region28: #{tpu_custom_call.1} parent=1 // pred_region
      %92 = dma.done [#allocation4], 16
    $region29: #{tpu_custom_call.1} parent=1 // pred_fallthru
      _
    %93 = vsyncpa [#allocation3], 1
    %94 = vsyncpa [#allocation4], 1
    %95 = vsyncpa [#allocation5], 1

</llo_original>
